<compile_context>
chip_gen: v7x
topology: tpu7x:2x2x1
jax: 0.10.0
libtpu: 0.0.40
codegen_flags: <defaults>
</compile_context>

<pallas_src>
import jax
import jax.numpy as jnp
from jax.experimental import pallas as pl
from jax.experimental.pallas import tpu as pltpu


def _fusion_kernel(x_ref, w_ref, b_ref, fused_ref, attn_ref):
    # x_ref:     (block_B, N, d)  native dtype, one batch tile
    # w_ref:     (1, d)           attn_fc weight (row vector), VMEM-resident
    # b_ref:     (1,)             attn_fc bias, SMEM scalar
    # fused_ref: (block_B, d)
    # attn_ref:  (block_B, N)
    x = x_ref[...].astype(jnp.float32)            # (bB, N, d)
    w = w_ref[...].astype(jnp.float32)            # (1, d)
    b = b_ref[0]                                  # scalar from SMEM

    # Linear(d, 1): per-branch scores (bB, N). Lane reduction over d (VPU/XLU).
    scores = jnp.sum(x * w[None, :, :], axis=-1) + b          # (bB, N)

    # Numerically stable softmax over the branch axis N.
    m = jnp.max(scores, axis=-1, keepdims=True)
    e = jnp.exp(scores - m)
    denom = jnp.sum(e, axis=-1, keepdims=True)
    attn = e / denom                                           # (bB, N)

    # fused[b, :] = sum_n attn[b, n] * x[b, n, :]  -- VPU multiply + sublane
    # reduction over the branch axis; no MXU involved.
    fused = jnp.sum(attn[:, :, None] * x, axis=1)              # (bB, d)

    fused_ref[...] = fused.astype(fused_ref.dtype)
    attn_ref[...] = attn.astype(attn_ref.dtype)


def multi_branch_attention_fusion(x, w, b, *, max_block_b=512):
    """x: (B, N, d); w: (d,); b: scalar -> (fused (B, d), attn (B, N))."""
    B, N, d = x.shape
    w2 = w.reshape(1, d)
    b1 = jnp.asarray(b, jnp.float32).reshape(1)

    # Batch tile: either the whole batch (small B) or a multiple-of-8 tile.
    block_b = B if B <= max_block_b else max_block_b
    grid = (pl.cdiv(B, block_b),)

    fused, attn = pl.pallas_call(
        _fusion_kernel,
        grid=grid,
        in_specs=[
            pl.BlockSpec((block_b, N, d), lambda i: (i, 0, 0)),   # x tile
            pl.BlockSpec((1, d), lambda i: (0, 0)),               # weight (resident)
            pl.BlockSpec(memory_space=pltpu.MemorySpace.SMEM),    # bias scalar
        ],
        out_specs=[
            pl.BlockSpec((block_b, d), lambda i: (i, 0)),         # fused
            pl.BlockSpec((block_b, N), lambda i: (i, 0)),         # attn weights
        ],
        out_shape=(
            jax.ShapeDtypeStruct((B, d), x.dtype),
            jax.ShapeDtypeStruct((B, N), x.dtype),
        ),
        compiler_params=pltpu.CompilerParams(
            dimension_semantics=("parallel",),
        ),
    )(x, w2, b1)
    return fused, attn


def _reference(x, w, b):
    scores = jnp.einsum("bnd,d->bn", x, w) + b            # (B, N)
    attn = jax.nn.softmax(scores, axis=1)                 # softmax over branches
    fused = jnp.einsum("bn,bnd->bd", attn, x)
    return fused, attn


if __name__ == "__main__":
    key = jax.random.PRNGKey(0)
    kx, kw, kb = jax.random.split(key, 3)

    B, N, d = 2, 8, 32  # batch, branches, feature_dim
    x = jax.random.normal(kx, (B, N, d), dtype=jnp.float32)

    # Deterministic "nn.Linear(feature_dim, 1)" parameters.
    w = jax.random.normal(kw, (d,), dtype=jnp.float32) * (1.0 / jnp.sqrt(d))
    b = jax.random.normal(kb, (), dtype=jnp.float32) * 0.1

    fused, attn = multi_branch_attention_fusion(x, w, b)
    jax.block_until_ready((fused, attn))

    fused_ref, attn_ref = _reference(x, w, b)
    assert fused.shape == (B, d) and attn.shape == (B, N)
    assert jnp.allclose(fused, fused_ref, atol=1e-5, rtol=1e-5)
    assert jnp.allclose(attn, attn_ref, atol=1e-5, rtol=1e-5)
    assert jnp.allclose(jnp.sum(attn, axis=1), 1.0, atol=1e-5)

    print("KERNEL_OK")
</pallas_src>

<mosaic_0001>
module attributes {stable_mosaic.version = 11 : i64} {
  func.func @_fusion_kernel(%arg0: i32, %arg1: memref<2x8x32xf32, #tpu.memory_space<vmem>>, %arg2: memref<1x32xf32, #tpu.memory_space<vmem>>, %arg3: memref<1xf32, #tpu.memory_space<smem>>, %arg4: memref<2x32xf32, #tpu.memory_space<vmem>>, %arg5: memref<2x8xf32, #tpu.memory_space<vmem>>) attributes {dimension_semantics = [#tpu.dimension_semantics<parallel>], iteration_bounds = array<i64: 1>, scalar_prefetch = 0 : i64, scratch_operands = 0 : i64, tpu.core_type = #tpu.core_type<tc>, window_params = [{transform_indices = @transform_0, window_bounds = array<i64: 2, 8, 32>}, {pipeline_mode = #tpu.pipeline_mode<synchronous>, transform_indices = @transform_1, window_bounds = array<i64: 1, 32>}, {transform_indices = @transform_2, window_bounds = array<i64: 1>}, {transform_indices = @transform_3, window_bounds = array<i64: 2, 32>}, {transform_indices = @transform_4, window_bounds = array<i64: 2, 8>}]} {
    %c0 = arith.constant 0 : index
    %c0_0 = arith.constant 0 : index
    %c0_1 = arith.constant 0 : index
    %0 = vector.load %arg1[%c0, %c0_0, %c0_1] : memref<2x8x32xf32, #tpu.memory_space<vmem>>, vector<2x8x32xf32>
    %c0_2 = arith.constant 0 : index
    %c0_3 = arith.constant 0 : index
    %1 = vector.load %arg2[%c0_2, %c0_3] : memref<1x32xf32, #tpu.memory_space<vmem>>, vector<1x32xf32>
    %c0_4 = arith.constant 0 : index
    %2 = memref.load %arg3[%c0_4] : memref<1xf32, #tpu.memory_space<smem>>
    %3 = vector.shape_cast %1 : vector<1x32xf32> to vector<1x1x32xf32>
    %4 = vector.broadcast %3 : vector<1x1x32xf32> to vector<2x8x32xf32>
    %5 = arith.mulf %0, %4 : vector<2x8x32xf32>
    %cst = arith.constant dense<0.000000e+00> : vector<2x8xf32>
    %6 = vector.multi_reduction <add>, %5, %cst [2] : vector<2x8x32xf32> to vector<2x8xf32>
    %7 = vector.broadcast %2 : f32 to vector<2x8xf32>
    %8 = arith.addf %6, %7 : vector<2x8xf32>
    %cst_5 = arith.constant dense<0xFF800000> : vector<2xf32>
    %9 = vector.multi_reduction <maximumf>, %8, %cst_5 [1] : vector<2x8xf32> to vector<2xf32>
    %10 = vector.shape_cast %9 : vector<2xf32> to vector<2x1xf32>
    %11 = vector.broadcast %10 : vector<2x1xf32> to vector<2x8xf32>
    %12 = arith.subf %8, %11 : vector<2x8xf32>
    %13 = math.exp %12 : vector<2x8xf32>
    %cst_6 = arith.constant dense<0.000000e+00> : vector<2xf32>
    %14 = vector.multi_reduction <add>, %13, %cst_6 [1] : vector<2x8xf32> to vector<2xf32>
    %15 = vector.shape_cast %14 : vector<2xf32> to vector<2x1xf32>
    %16 = vector.broadcast %15 : vector<2x1xf32> to vector<2x8xf32>
    %17 = arith.divf %13, %16 : vector<2x8xf32>
    %18 = vector.shape_cast %17 : vector<2x8xf32> to vector<2x8x1xf32>
    %19 = vector.broadcast %18 : vector<2x8x1xf32> to vector<2x8x32xf32>
    %20 = arith.mulf %19, %0 : vector<2x8x32xf32>
    %cst_7 = arith.constant dense<0.000000e+00> : vector<2x32xf32>
    %21 = vector.multi_reduction <add>, %20, %cst_7 [1] : vector<2x8x32xf32> to vector<2x32xf32>
    %c0_8 = arith.constant 0 : index
    %c0_9 = arith.constant 0 : index
    %22 = vector.load %arg4[%c0_8, %c0_9] : memref<2x32xf32, #tpu.memory_space<vmem>>, vector<2x32xf32>
    tpu.vector_store %arg4[%c0_8, %c0_9], %21 {strides = array<i32>} : memref<2x32xf32, #tpu.memory_space<vmem>>, vector<2x32xf32>,
    %c0_10 = arith.constant 0 : index
    %c0_11 = arith.constant 0 : index
    %23 = vector.load %arg5[%c0_10, %c0_11] : memref<2x8xf32, #tpu.memory_space<vmem>>, vector<2x8xf32>
    tpu.vector_store %arg5[%c0_10, %c0_11], %17 {strides = array<i32>} : memref<2x8xf32, #tpu.memory_space<vmem>>, vector<2x8xf32>,
    return
  }
  func.func @transform_0(%arg0: i32) -> (i32, i32, i32) {
    %c0_i32 = arith.constant 0 : i32
    %c0_i32_0 = arith.constant 0 : i32
    %c0_i32_1 = arith.constant 0 : i32
    return %arg0, %c0_i32, %c0_i32_0 : i32, i32, i32
  }
  func.func @transform_1(%arg0: i32) -> (i32, i32) {
    %c0_i32 = arith.constant 0 : i32
    %c0_i32_0 = arith.constant 0 : i32
    %c0_i32_1 = arith.constant 0 : i32
    return %c0_i32, %c0_i32_0 : i32, i32
  }
  func.func @transform_2(%arg0: i32) -> i32 {
    %c0_i32 = arith.constant 0 : i32
    %c0_i32_0 = arith.constant 0 : i32
    return %c0_i32 : i32
  }
  func.func @transform_3(%arg0: i32) -> (i32, i32) {
    %c0_i32 = arith.constant 0 : i32
    %c0_i32_0 = arith.constant 0 : i32
    return %arg0, %c0_i32 : i32, i32
  }
  func.func @transform_4(%arg0: i32) -> (i32, i32) {
    %c0_i32 = arith.constant 0 : i32
    %c0_i32_0 = arith.constant 0 : i32
    return %arg0, %c0_i32 : i32, i32
  }
}

</mosaic_0001>

<llo_original>
// kernel: tpu_custom_call.1
$region0: #{tpu_custom_call.1}
  #allocation0 [shape = 'u32[]', space=smem, size = 0x4, offset = 0x4, fixed_abs, tag = 'smem constant byte address 0x4 - core index']
  #allocation1 [shape = 'u32[144,128]{1,0:T(1,128)}', space=vmem, size = 0x12000, scoped, tag = 'internal scratch']
  #allocation2 [shape = 'f32[1]{0:T(128)S(6)}', space=smem, size = 0x200, scoped, tag = 'scoped memory for tpu_custom_call.1']
  %s0 = inlined_call_operand.hbm [shape: f32[2,8,32], index: 0, kind: input, shape index: {}]
  %s1 = inlined_call_operand.vmem [shape: f32[1,32], index: 1, kind: input, shape index: {}]
  %s2 = inlined_call_operand.<no memory space> [shape: f32[1], index: 2, kind: input, shape index: {}]
  %s3 = inlined_call_operand.hbm [shape: f32[2,32], index: 3, kind: output, shape index: {0}]
  %s4 = inlined_call_operand.hbm [shape: f32[2,8], index: 4, kind: output, shape index: {1}]
  %5 = xla_tuple %s3, %s4
  %s6 = sld [smem:[#allocation0]]
  $region34: #{tpu_custom_call.1} parent=0
    _
  %s8 = ssub.s32 1, %s6
  %s9 = scalar_select 0, %s8, %s6
  %10 = sst [smem:[#allocation2]] %s2
  $region1: #{tpu_custom_call.1} parent=0
    #allocation3 [shape = 'u8[8192]{0}', space=vmem, size = 0x2000, scoped, tag = 'input window, operand 0, single buffered']
    #allocation4 [shape = 's32[1]{0}', space=sflag, size = 0x4, scoped, tag = 'scoped memory for tpu_custom_call.1']
    #allocation5 [shape = 's32[1]{0}', space=sflag, size = 0x4, scoped, tag = 'scoped memory for tpu_custom_call.1']
    #allocation6 [shape = 'u8[1024]{0}', space=vmem, size = 0x400, scoped, tag = 'output window, operand 0, single buffered']
    #allocation7 [shape = 'u8[1024]{0}', space=vmem, size = 0x400, scoped, tag = 'output window, operand 1, single buffered']
    #allocation8 [shape = 's32[1]{0}', space=sflag, size = 0x4, scoped, tag = 'scoped memory for tpu_custom_call.1']
    %11 = vsyncpa [#allocation4], 0
    %12 = vsyncpa [#allocation5], 0
    %13 = vsyncpa [#allocation8], 0
    // Predicated region
    $region2: #{tpu_custom_call.1} parent=1 // pred_check
      _
    $region3: #{tpu_custom_call.1} parent=1 // pred_check_branch
      %15 = sbr.rel (0) target = $region5
    $region4: #{tpu_custom_call.1} parent=1 // pred_region
      %s17 = ssub.s32 256, 256
      %18 = vsyncadd [#allocation4], %s17
      %s19 = sshll.u32 [#allocation3], 4
      %s20 = int_to_ptr.vmem [resolvable:$true] %s19
      %25 = dma.hbm_to_vmem [thread:$0]  %s0, 256, %s20, [#allocation4], 128, 128, 8
    $region5: #{tpu_custom_call.1} parent=1 // pred_fallthru
      _
    // Predicated region
    $region6: #{tpu_custom_call.1} parent=1 // pred_check
      _
    $region7: #{tpu_custom_call.1} parent=1 // pred_check_branch
      %27 = sbr.rel (0) target = $region9
    $region8: #{tpu_custom_call.1} parent=1 // pred_region
      _
    $region9: #{tpu_custom_call.1} parent=1 // pred_fallthru
      _
    // Predicated region
    $region10: #{tpu_custom_call.1} parent=1 // pred_check
      _
    $region11: #{tpu_custom_call.1} parent=1 // pred_check_branch
      %29 = sbr.rel (0) target = $region13
    $region12: #{tpu_custom_call.1} parent=1 // pred_region
      _
    $region13: #{tpu_custom_call.1} parent=1 // pred_fallthru
      _
    // Predicated region
    $region14: #{tpu_custom_call.1} parent=1 // pred_check
      _
    $region15: #{tpu_custom_call.1} parent=1 // pred_check_branch
      %31 = sbr.rel (0) target = $region17
    $region16: #{tpu_custom_call.1} parent=1 // pred_region
      %32 = dma.done [#allocation4], 256
    $region17: #{tpu_custom_call.1} parent=1 // pred_fallthru
      _
    %v33 = vld [vmem:[#allocation3] sm:$0xff]
    %v34 = vld [vmem:[#allocation3 + $0x8] sm:$0xff]
    %v35 = vld [vmem:[%s1] sm:$0x1]
    %s36 = sld [smem:[#allocation2]]
    %v38 = vlaneseq
    %v39 = vshrl.u32 %v38, 7
    %v40 = vsub.s32 0, %v39
    %v41 = vrot.slane %v35, %v40
    %v43 = vmul.f32 %v33, %v41
    %v44 = vmul.f32 %v34, %v41
    %vm45 = vcmask 261120
    %v46 = vsel %vm45, %v43, 0.0
    %47 = vadd.xlane.f32.xlu0 %v46
    %v48 = vpop.xlane.xlu0 %47
    %v49 = vsel %vm45, %v44, 0.0
    %50 = vadd.xlane.f32.xlu0 %v49
    %v51 = vpop.xlane.xlu0 %50
    %v52 = vstv %s36
    %v53 = vadd.f32 %v48, %v52
    %v54 = vadd.f32 %v51, %v52
    %v57 = vlaneseq
    %v58 = vand.u32 %v57, 127
    %v59 = vlaneseq
    %v60 = vshrl.u32 %v59, 7
    %v61 = vsub.s32 %v58, %v60
    %v62 = vrot.slane %v53, %v61
    %v63 = vlaneseq
    %v64 = vshrl.u32 %v63, 7
    %v65 = vsub.s32 %v58, %v64
    %v66 = vrot.slane %v54, %v65
    %vm67 = vcmask 1041409
    %v68 = vsel %vm67, %v66, %v62
    %vm70 = vcmask 58368
    %v71 = vsel %vm70, %v68, -inf
    %72 = vmax.xlane.f32.xlu0 %v71
    %v73 = vpop.xlane.xlu0 %72
    %v75 = vlaneseq
    %v76 = vshrl.u32 %v75, 7
    %v77 = vsub.s32 0, %v76
    %v78 = vrot.slane %v73, %v77
    %v79 = vlaneseq
    %v80 = vshrl.u32 %v79, 7
    %v81 = vsub.s32 1, %v80
    %v82 = vrot.slane %v73, %v81
    %v85 = vsub.f32 %v53, %v78
    %v86 = vsub.f32 %v54, %v82
    %v87 = vmul.f32 %v85, 1.442695
    %v88 = vpow.pop %v87
    %v89 = vmul.f32 %v86, 1.442695
    %v90 = vpow.pop %v89
    %93 = vset.pattern.permute.xlu0 0
    %94 = vperm.xlu0 %93, %v88
    %v95 = vpop.permute.xlu0 %94
    %96 = vset.pattern.permute.xlu0 0
    %97 = vperm.xlu0 %96, %v90
    %v98 = vpop.permute.xlu0 %97
    %v99 = vlaneseq
    %v100 = vshrl.u32 %v99, 7
    %v101 = vsub.s32 %v58, %v100
    %v102 = vrot.slane %v95, %v101
    %v103 = vlaneseq
    %v104 = vshrl.u32 %v103, 7
    %v105 = vsub.s32 %v58, %v104
    %v106 = vrot.slane %v98, %v105
    %v107 = vsel %vm67, %v106, %v102
    %v109 = vsel %vm70, %v107, 0.0
    %110 = vadd.xlane.f32.xlu0 %v109
    %v111 = vpop.xlane.xlu0 %110
    %v113 = vlaneseq
    %v114 = vshrl.u32 %v113, 7
    %v115 = vsub.s32 0, %v114
    %v116 = vrot.slane %v111, %v115
    %v117 = vlaneseq
    %v118 = vshrl.u32 %v117, 7
    %v119 = vsub.s32 1, %v118
    %v120 = vrot.slane %v111, %v119
    %v123 = vrcp.pop %v116
    %v124 = vmul.f32 %v88, %v123
    %v125 = vrcp.pop %v120
    %v126 = vmul.f32 %v90, %v125
    %128 = vset.pattern.permute.xlu0 0
    %129 = vperm.xlu0 %128, %v124
    %v130 = vpop.permute.xlu0 %129
    %133 = vset.pattern.permute.xlu0 0
    %134 = vperm.xlu0 %133, %v126
    %v135 = vpop.permute.xlu0 %134
    %v137 = vmul.f32 %v130, %v33
    %v138 = vmul.f32 %v135, %v34
    %v139 = vsel %vm45, %v137, 0.0
    %v140 = vrot.slane %v139, 4
    %v141 = vadd.f32 %v139, %v140
    %v142 = vrot.slane %v141, 2
    %v143 = vadd.f32 %v141, %v142
    %v144 = vrot.slane %v143, 1
    %v145 = vadd.f32 %v143, %v144
    %v146 = vsel %vm45, %v138, 0.0
    %v147 = vrot.slane %v146, 4
    %v148 = vadd.f32 %v146, %v147
    %v149 = vrot.slane %v148, 2
    %v150 = vadd.f32 %v148, %v149
    %v151 = vrot.slane %v150, 1
    %v152 = vadd.f32 %v150, %v151
    %v155 = vsel %vm67, %v152, %v145
    %vm157 = vcmask 254976
    %158 = vst.msk [vmem:[#allocation6] sm:$0x3] %vm157, %v155
    %v159 = vlaneseq
    %v160 = vshrl.u32 %v159, 7
    %v161 = vsub.s32 %v58, %v160
    %v162 = vrot.slane %v130, %v161
    %v163 = vlaneseq
    %v164 = vshrl.u32 %v163, 7
    %v165 = vsub.s32 %v58, %v164
    %v166 = vrot.slane %v135, %v165
    %v167 = vsel %vm67, %v166, %v162
    %169 = vst.msk [vmem:[#allocation7] sm:$0x3] %vm70, %v167
    // Predicated region
    $region18: #{tpu_custom_call.1} parent=1 // pred_check
      _
    $region19: #{tpu_custom_call.1} parent=1 // pred_check_branch
      %171 = sbr.rel (0) target = $region21
    $region20: #{tpu_custom_call.1} parent=1 // pred_region
      %s173 = ssub.s32 32, 32
      %174 = vsyncadd [#allocation5], %s173
      %s176 = sshll.u32 [#allocation6], 4
      %s177 = int_to_ptr.vmem [resolvable:$true] %s176
      %179 = dma.vmem_to_hbm [thread:$0]  %s177, 32, %s3, [#allocation5]
    $region21: #{tpu_custom_call.1} parent=1 // pred_fallthru
      _
    // Predicated region
    $region22: #{tpu_custom_call.1} parent=1 // pred_check
      _
    $region23: #{tpu_custom_call.1} parent=1 // pred_check_branch
      %181 = sbr.rel (0) target = $region25
    $region24: #{tpu_custom_call.1} parent=1 // pred_region
      %s183 = ssub.s32 32, 32
      %184 = vsyncadd [#allocation8], %s183
      %s186 = sshll.u32 [#allocation7], 4
      %s187 = int_to_ptr.vmem [resolvable:$true] %s186
      %189 = dma.vmem_to_hbm [thread:$0]  %s187, 32, %s4, [#allocation8]
    $region25: #{tpu_custom_call.1} parent=1 // pred_fallthru
      _
    // Predicated region
    $region26: #{tpu_custom_call.1} parent=1 // pred_check
      _
    $region27: #{tpu_custom_call.1} parent=1 // pred_check_branch
      %191 = sbr.rel (0) target = $region29
    $region28: #{tpu_custom_call.1} parent=1 // pred_region
      %192 = dma.done [#allocation5], 32
    $region29: #{tpu_custom_call.1} parent=1 // pred_fallthru
      _
    // Predicated region
    $region30: #{tpu_custom_call.1} parent=1 // pred_check
      _
    $region31: #{tpu_custom_call.1} parent=1 // pred_check_branch
      %194 = sbr.rel (0) target = $region33
    $region32: #{tpu_custom_call.1} parent=1 // pred_region
      %195 = dma.done [#allocation8], 32
    $region33: #{tpu_custom_call.1} parent=1 // pred_fallthru
      _
    %196 = vsyncpa [#allocation4], 1
    %197 = vsyncpa [#allocation5], 1
    %198 = vsyncpa [#allocation8], 1

</llo_original>
